<compile_context>
chip_gen: v7x
topology: tpu7x:2x2x1
jax: 0.10.0
libtpu: 0.0.40
codegen_flags: <defaults>
</compile_context>

<pallas_src>
import functools
import math

import jax
import jax.numpy as jnp
import numpy as np
from jax.experimental import pallas as pl
from jax.experimental.pallas import tpu as pltpu

SQRT2 = math.sqrt(2.0)
_TARGET_BLOCK_BYTES = 4 * 1024 * 1024   # ~4 MiB per block per direction
_VMEM_LIMIT_BYTES = 32 * 1024 * 1024    # in+out, double-buffered, + slack


# ----------------------------- Pallas kernel --------------------------------

def _scaled_leaky_relu_kernel(x_ref, o_ref, *, negative_slope):
    x = x_ref[...]
    pos = jnp.asarray(SQRT2, dtype=x.dtype)
    neg = jnp.asarray(float(negative_slope) * SQRT2, dtype=x.dtype)
    # One select + one multiply per vreg (sqrt(2) folded into the select).
    o_ref[...] = (x * jnp.where(x >= 0, pos, neg)).astype(o_ref.dtype)


# ------------------------------ wrapper --------------------------------------

def scaled_leaky_relu(x, negative_slope=0.2):
    """Elementwise leaky_relu(x, negative_slope) * sqrt(2), any shape."""
    orig_shape = x.shape
    orig_dtype = x.dtype
    n = x.size
    if n == 0:
        return x

    itemsize = np.dtype(orig_dtype).itemsize
    # Sub-32-bit dtypes pack along sublanes: row tiles must be multiples of
    # 8 (4B), 16 (2B) or 32 (1B) to avoid packed/masked sublane handling.
    sublane = max(8, 32 // itemsize)

    xf = x.reshape(-1)

    # Lane-dense layout: largest column count (multiple of 128) that divides n
    # exactly -> no pad / slice round trip (each would be a full extra HBM pass).
    cols = None
    for c in (2048, 1024, 512, 256, 128):
        if n % c == 0:
            cols = c
            break

    if cols is None:
        # Rare tail-misaligned fallback: pad the flat view up to 128 lanes.
        cols = 128
        rows = pl.cdiv(n, cols)
        xf = jnp.pad(xf, (0, rows * cols - n))
        need_slice = True
    else:
        rows = n // cols
        need_slice = False

    x2 = xf.reshape(rows, cols)

    if rows <= sublane:
        # Tiny input: one block equal to the whole (rows, cols) slab.
        tile_rows = rows
    else:
        rows_padded = pl.cdiv(rows, sublane) * sublane
        # Cap block bytes so in+out double-buffered stays well under the
        # scoped-VMEM limit on every generation (v5e 16 MiB default, v7x 64 MiB
        # physical).
        max_rows_by_vmem = max(
            sublane,
            (_TARGET_BLOCK_BYTES // (cols * itemsize)) // sublane * sublane)
        tile_rows = min(rows_padded, max_rows_by_vmem)
        # Keep >= ~4 grid steps when possible so v7x can shard the "parallel"
        # axis across its 2 TensorCores (no-op on single-TC v5e / v6e).
        if rows_padded >= 4 * sublane:
            quarter = pl.cdiv(pl.cdiv(rows_padded, 4), sublane) * sublane
            tile_rows = min(tile_rows, max(sublane, quarter))

    grid = (pl.cdiv(rows, tile_rows),)   # ragged last block -> masked writeback

    out = pl.pallas_call(
        functools.partial(_scaled_leaky_relu_kernel,
                          negative_slope=float(negative_slope)),
        out_shape=jax.ShapeDtypeStruct((rows, cols), orig_dtype),
        grid_spec=pltpu.PrefetchScalarGridSpec(
            num_scalar_prefetch=0,
            grid=grid,
            in_specs=[pl.BlockSpec((tile_rows, cols), lambda i: (i, 0))],
            out_specs=pl.BlockSpec((tile_rows, cols), lambda i: (i, 0)),
        ),
        compiler_params=pltpu.CompilerParams(
            dimension_semantics=("parallel",),   # v7x: shard steps across 2 TCs
            vmem_limit_bytes=_VMEM_LIMIT_BYTES,
        ),
    )(x2)

    out = out.reshape(-1)
    if need_slice:
        out = out[:n]
    return out.reshape(orig_shape)


# ------------------------------- main -----------------------------------------

if __name__ == "__main__":
    key = jax.random.PRNGKey(0)
    x = jax.random.normal(key, (2, 4, 16, 16), jnp.float32)

    fwd = jax.jit(scaled_leaky_relu)
    out = fwd(x)
    out = jax.block_until_ready(out)

    # Pure-JAX reference: F.leaky_relu(x, 0.2) * sqrt(2)
    ref = jnp.where(x >= 0.0, x, 0.2 * x) * math.sqrt(2.0)

    assert out.shape == x.shape, out.shape
    assert out.dtype == x.dtype, out.dtype
    assert bool(jnp.all(jnp.isfinite(out)))
    assert bool(jnp.allclose(out, ref, atol=1e-6, rtol=1e-5))
    print("KERNEL_OK")
</pallas_src>

<mosaic_0001>
module attributes {stable_mosaic.version = 11 : i64} {
  func.func @_scaled_leaky_relu_kernel(%arg0: i32, %arg1: memref<1x2048xf32, #tpu.memory_space<vmem>>, %arg2: memref<1x2048xf32, #tpu.memory_space<vmem>>) attributes {dimension_semantics = [#tpu.dimension_semantics<parallel>], iteration_bounds = array<i64: 1>, scalar_prefetch = 0 : i64, scratch_operands = 0 : i64, tpu.core_type = #tpu.core_type<tc>, window_params = [{transform_indices = @transform_0, window_bounds = array<i64: 1, 2048>}, {transform_indices = @transform_1, window_bounds = array<i64: 1, 2048>}]} {
    %c0 = arith.constant 0 : index
    %c0_0 = arith.constant 0 : index
    %0 = vector.load %arg1[%c0, %c0_0] : memref<1x2048xf32, #tpu.memory_space<vmem>>, vector<1x2048xf32>
    %cst = arith.constant 0.000000e+00 : f32
    %1 = vector.broadcast %cst : f32 to vector<1x2048xf32>
    %2 = arith.cmpf oge, %0, %1 : vector<1x2048xf32>
    %cst_1 = arith.constant 1.41421354 : f32
    %cst_2 = arith.constant 0.282842726 : f32
    %3 = vector.broadcast %cst_1 : f32 to vector<1x2048xf32>
    %4 = vector.broadcast %cst_2 : f32 to vector<1x2048xf32>
    %5 = arith.select %2, %3, %4 : vector<1x2048xi1>, vector<1x2048xf32>
    %6 = arith.mulf %0, %5 : vector<1x2048xf32>
    %c0_3 = arith.constant 0 : index
    %c0_4 = arith.constant 0 : index
    %7 = vector.load %arg2[%c0_3, %c0_4] : memref<1x2048xf32, #tpu.memory_space<vmem>>, vector<1x2048xf32>
    tpu.vector_store %arg2[%c0_3, %c0_4], %6 {strides = array<i32>} : memref<1x2048xf32, #tpu.memory_space<vmem>>, vector<1x2048xf32>,
    return
  }
  func.func @transform_0(%arg0: i32) -> (i32, i32) {
    %c0_i32 = arith.constant 0 : i32
    %c0_i32_0 = arith.constant 0 : i32
    return %arg0, %c0_i32 : i32, i32
  }
  func.func @transform_1(%arg0: i32) -> (i32, i32) {
    %c0_i32 = arith.constant 0 : i32
    %c0_i32_0 = arith.constant 0 : i32
    return %arg0, %c0_i32 : i32, i32
  }
}

</mosaic_0001>

<llo_original>
// kernel: scaled_leaky_relu.1
$region0: #{scaled_leaky_relu.1}
  #allocation0 [shape = 'u32[]', space=smem, size = 0x4, offset = 0x4, fixed_abs, tag = 'smem constant byte address 0x4 - core index']
  #allocation1 [shape = 'u32[144,128]{1,0:T(1,128)}', space=vmem, size = 0x12000, scoped, tag = 'internal scratch']
  %s0 = inlined_call_operand.vmem [shape: f32[1,2048], index: 0, kind: input, shape index: {}]
  %s1 = inlined_call_operand.vmem [shape: f32[1,2048], index: 1, kind: output, shape index: {}]
  %s2 = sld [smem:[#allocation0]]
  $region14: #{scaled_leaky_relu.1} parent=0
    _
  %s4 = ssub.s32 1, %s2
  %s5 = scalar_select 0, %s4, %s2
  // Predicated region
  $region2: #{scaled_leaky_relu.1} parent=0 // pred_check
    _
  $region3: #{scaled_leaky_relu.1} parent=0 // pred_check_branch
    %7 = sbr.rel (0) target = $region5
  $region4: #{scaled_leaky_relu.1} parent=0 // pred_region
    _
  $region5: #{scaled_leaky_relu.1} parent=0 // pred_fallthru
    _
  %v8 = vld [vmem:[%s0] sm:$0xff]
  %v9 = vld [vmem:[%s0 + $0x8] sm:$0xff]
  %vm10 = vcmp.ge.f32.partialorder %v8, 0.0
  %vm11 = vcmp.ge.f32.partialorder %v9, 0.0
  %v12 = vsel %vm10, 1.4142135, 0.28284273
  %v13 = vsel %vm11, 1.4142135, 0.28284273
  %v14 = vmul.f32 %v8, %v12
  %v15 = vmul.f32 %v9, %v13
  %16 = vst [vmem:[%s1] sm:$0xff] %v14
  %17 = vst [vmem:[%s1 + $0x8] sm:$0xff] %v15
  // Predicated region
  $region6: #{scaled_leaky_relu.1} parent=0 // pred_check
    _
  $region7: #{scaled_leaky_relu.1} parent=0 // pred_check_branch
    %19 = sbr.rel (0) target = $region9
  $region8: #{scaled_leaky_relu.1} parent=0 // pred_region
    _
  $region9: #{scaled_leaky_relu.1} parent=0 // pred_fallthru
    _
  // Predicated region
  $region10: #{scaled_leaky_relu.1} parent=0 // pred_check
    _
  $region11: #{scaled_leaky_relu.1} parent=0 // pred_check_branch
    %21 = sbr.rel (0) target = $region13
  $region12: #{scaled_leaky_relu.1} parent=0 // pred_region
    _
  $region13: #{scaled_leaky_relu.1} parent=0 // pred_fallthru
    _

</llo_original>
